<compile_context>
chip_gen: v7x
topology: tpu7x:2x2x1
jax: 0.10.0
libtpu: 0.0.40
codegen_flags: <defaults>
</compile_context>

<pallas_src>
import functools
import math

import jax
import jax.numpy as jnp
from jax.experimental import pallas as pl
from jax.experimental.pallas import tpu as pltpu


def _round_up(x: int, m: int) -> int:
    return ((x + m - 1) // m) * m


def _int_pow(base, p: int):
    """Static integer power by squaring (p >= 1)."""
    assert p >= 1
    result = None
    while p:
        if p & 1:
            result = base if result is None else result * base
        p >>= 1
        if p:
            base = base * base
    return result


def _radial_embedding_kernel(x_ref, w_ref, o_ref, *, r_max, p, prefactor):
    # x_ref: (1, T) f32 edge lengths (edges on lanes)
    # w_ref: (B, 1) f32 bessel weights (resident tiny column)
    x = x_ref[...]                       # (1, T)
    w = w_ref[...]                       # (B, 1)

    # --- reciprocal of x on the small broadcast row: EUP approx + 1 Newton step
    inv_x = pl.reciprocal(x, approx=True)
    inv_x = inv_x * (2.0 - x * inv_x)

    # --- PolynomialCutoff envelope on the (1, T) row (power-by-squaring, static p)
    r = x * (1.0 / r_max)
    rp = _int_pow(r, p)                  # r ** p
    pf = float(p)
    c1 = (pf + 1.0) * (pf + 2.0) / 2.0
    c2 = pf * (pf + 2.0)
    c3 = pf * (pf + 1.0) / 2.0
    envelope = 1.0 - c1 * rp + c2 * (rp * r) - c3 * (rp * r * r)
    envelope = jnp.where(x < r_max, envelope, 0.0)

    # Fold prefactor, 1/x and the envelope into one (1, T) scale row so the only
    # full (B, T) work is the sin() and a single multiply.
    scale = (prefactor * inv_x) * envelope

    o_ref[...] = jnp.sin(w * x) * scale  # (B,1)*(1,T) -> (B,T)


def radial_embedding_block(edge_lengths, bessel_weights, *, r_max, p, tile_lanes=4096):
    """edge_lengths: [N] or [N, 1] f32; bessel_weights: [B] f32 -> [N, B] f32."""
    x = edge_lengths.reshape(-1).astype(jnp.float32)
    n = x.shape[0]
    b = bessel_weights.shape[0]

    # Lane-dense tiling: pick a large tile (multiple of 128), pad N up to it.
    n_pad128 = max(_round_up(n, 128), 128)
    tile = min(int(tile_lanes), n_pad128)
    n_total = _round_up(n, tile)
    pad = n_total - n
    # Pad with 1.0 (safe for 1/x); padded columns are sliced off afterwards.
    x_row = jnp.pad(x, (0, pad), constant_values=1.0).reshape(1, n_total)
    w_col = bessel_weights.reshape(b, 1).astype(jnp.float32)

    kernel = functools.partial(
        _radial_embedding_kernel,
        r_max=float(r_max),
        p=int(p),
        prefactor=math.sqrt(2.0 / float(r_max)),
    )

    out_bn = pl.pallas_call(
        kernel,
        out_shape=jax.ShapeDtypeStruct((b, n_total), jnp.float32),
        grid_spec=pltpu.PrefetchScalarGridSpec(
            num_scalar_prefetch=0,
            grid=(n_total // tile,),
            in_specs=[
                pl.BlockSpec((1, tile), lambda i: (0, i)),   # edges on lanes
                pl.BlockSpec((b, 1), lambda i: (0, 0)),      # resident weights
            ],
            out_specs=pl.BlockSpec((b, tile), lambda i: (0, i)),
        ),
        compiler_params=pltpu.CompilerParams(
            dimension_semantics=("parallel",),
        ),
    )(x_row, w_col)

    # Back to the module's [N, B] layout (drop padding, transpose in the wrapper).
    return out_bn[:, :n].T


def _reference(edge_lengths, bessel_weights, *, r_max, p):
    # edge_lengths: [N, 1]
    prefactor = math.sqrt(2.0 / r_max)
    radial = prefactor * jnp.sin(bessel_weights[None, :] * edge_lengths) / edge_lengths
    r = edge_lengths / r_max
    pf = float(p)
    env = (
        1.0
        - (pf + 1.0) * (pf + 2.0) / 2.0 * r ** p
        + pf * (pf + 2.0) * r ** (p + 1)
        - pf * (pf + 1.0) / 2.0 * r ** (p + 2)
    )
    env = env * (edge_lengths < r_max).astype(edge_lengths.dtype)
    return radial * env


if __name__ == "__main__":
    r_max = 5.0
    num_bessel = 8
    num_polynomial_cutoff = 6

    # Deterministic "parameters" as in BesselBasis.__init__
    bessel_weights = (math.pi / r_max) * jnp.linspace(
        1.0, float(num_bessel), num_bessel, dtype=jnp.float32
    )

    # Small synthetic edge lengths in (0, r_max * 1.2) so some edges exceed the cutoff.
    key = jax.random.PRNGKey(0)
    n_edges = 64
    edge_lengths = jax.random.uniform(
        key, (n_edges, 1), dtype=jnp.float32, minval=0.1, maxval=r_max * 1.2
    )

    out = radial_embedding_block(
        edge_lengths, bessel_weights, r_max=r_max, p=num_polynomial_cutoff
    )
    out = jax.block_until_ready(out)

    ref = _reference(edge_lengths, bessel_weights, r_max=r_max, p=num_polynomial_cutoff)
    assert out.shape == (n_edges, num_bessel)
    assert jnp.max(jnp.abs(out - ref)) < 5e-5

    print("KERNEL_OK")
</pallas_src>

<mosaic_0001>
module attributes {stable_mosaic.version = 11 : i64} {
  func.func @_radial_embedding_kernel(%arg0: i32, %arg1: memref<1x128xf32, #tpu.memory_space<vmem>>, %arg2: memref<8x1xf32, #tpu.memory_space<vmem>>, %arg3: memref<8x128xf32, #tpu.memory_space<vmem>>) attributes {dimension_semantics = [#tpu.dimension_semantics<parallel>], iteration_bounds = array<i64: 1>, scalar_prefetch = 0 : i64, scratch_operands = 0 : i64, tpu.core_type = #tpu.core_type<tc>, window_params = [{transform_indices = @transform_0, window_bounds = array<i64: 1, 128>}, {pipeline_mode = #tpu.pipeline_mode<synchronous>, transform_indices = @transform_1, window_bounds = array<i64: 8, 1>}, {transform_indices = @transform_2, window_bounds = array<i64: 8, 128>}]} {
    %c0 = arith.constant 0 : index
    %c0_0 = arith.constant 0 : index
    %0 = vector.load %arg1[%c0, %c0_0] : memref<1x128xf32, #tpu.memory_space<vmem>>, vector<1x128xf32>
    %c0_1 = arith.constant 0 : index
    %c0_2 = arith.constant 0 : index
    %1 = vector.load %arg2[%c0_1, %c0_2] : memref<8x1xf32, #tpu.memory_space<vmem>>, vector<8x1xf32>
    %2 = tpu.reciprocal %0 {approx = true} : vector<1x128xf32> -> vector<1x128xf32>
    %3 = arith.mulf %0, %2 : vector<1x128xf32>
    %cst = arith.constant 2.000000e+00 : f32
    %4 = vector.broadcast %cst : f32 to vector<1x128xf32>
    %5 = arith.subf %4, %3 : vector<1x128xf32>
    %6 = arith.mulf %2, %5 : vector<1x128xf32>
    %cst_3 = arith.constant 2.000000e-01 : f32
    %7 = vector.broadcast %cst_3 : f32 to vector<1x128xf32>
    %8 = arith.mulf %0, %7 : vector<1x128xf32>
    %9 = arith.mulf %8, %8 : vector<1x128xf32>
    %10 = arith.mulf %9, %9 : vector<1x128xf32>
    %11 = arith.mulf %9, %10 : vector<1x128xf32>
    %cst_4 = arith.constant 2.800000e+01 : f32
    %12 = vector.broadcast %cst_4 : f32 to vector<1x128xf32>
    %13 = arith.mulf %12, %11 : vector<1x128xf32>
    %cst_5 = arith.constant 1.000000e+00 : f32
    %14 = vector.broadcast %cst_5 : f32 to vector<1x128xf32>
    %15 = arith.subf %14, %13 : vector<1x128xf32>
    %16 = arith.mulf %11, %8 : vector<1x128xf32>
    %cst_6 = arith.constant 4.800000e+01 : f32
    %17 = vector.broadcast %cst_6 : f32 to vector<1x128xf32>
    %18 = arith.mulf %17, %16 : vector<1x128xf32>
    %19 = arith.addf %15, %18 : vector<1x128xf32>
    %20 = arith.mulf %11, %8 : vector<1x128xf32>
    %21 = arith.mulf %20, %8 : vector<1x128xf32>
    %cst_7 = arith.constant 2.100000e+01 : f32
    %22 = vector.broadcast %cst_7 : f32 to vector<1x128xf32>
    %23 = arith.mulf %22, %21 : vector<1x128xf32>
    %24 = arith.subf %19, %23 : vector<1x128xf32>
    %cst_8 = arith.constant 5.000000e+00 : f32
    %25 = vector.broadcast %cst_8 : f32 to vector<1x128xf32>
    %26 = arith.cmpf olt, %0, %25 : vector<1x128xf32>
    %cst_9 = arith.constant 0.000000e+00 : f32
    %27 = vector.broadcast %cst_9 : f32 to vector<1x128xf32>
    %28 = arith.select %26, %24, %27 : vector<1x128xi1>, vector<1x128xf32>
    %cst_10 = arith.constant 0.632455527 : f32
    %29 = vector.broadcast %cst_10 : f32 to vector<1x128xf32>
    %30 = arith.mulf %29, %6 : vector<1x128xf32>
    %31 = arith.mulf %30, %28 : vector<1x128xf32>
    %32 = vector.broadcast %1 : vector<8x1xf32> to vector<8x128xf32>
    %33 = vector.broadcast %0 : vector<1x128xf32> to vector<8x128xf32>
    %34 = arith.mulf %32, %33 : vector<8x128xf32>
    %35 = math.sin %34 : vector<8x128xf32>
    %36 = vector.broadcast %31 : vector<1x128xf32> to vector<8x128xf32>
    %37 = arith.mulf %35, %36 : vector<8x128xf32>
    %c0_11 = arith.constant 0 : index
    %c0_12 = arith.constant 0 : index
    %38 = vector.load %arg3[%c0_11, %c0_12] : memref<8x128xf32, #tpu.memory_space<vmem>>, vector<8x128xf32>
    tpu.vector_store %arg3[%c0_11, %c0_12], %37 {strides = array<i32>} : memref<8x128xf32, #tpu.memory_space<vmem>>, vector<8x128xf32>,
    return
  }
  func.func @transform_0(%arg0: i32) -> (i32, i32) {
    %c0_i32 = arith.constant 0 : i32
    %c0_i32_0 = arith.constant 0 : i32
    return %c0_i32, %arg0 : i32, i32
  }
  func.func @transform_1(%arg0: i32) -> (i32, i32) {
    %c0_i32 = arith.constant 0 : i32
    %c0_i32_0 = arith.constant 0 : i32
    %c0_i32_1 = arith.constant 0 : i32
    return %c0_i32, %c0_i32_0 : i32, i32
  }
  func.func @transform_2(%arg0: i32) -> (i32, i32) {
    %c0_i32 = arith.constant 0 : i32
    %c0_i32_0 = arith.constant 0 : i32
    return %c0_i32, %arg0 : i32, i32
  }
}

</mosaic_0001>

<llo_original>
// kernel: tpu_custom_call.1
$region0: #{tpu_custom_call.1}
  #allocation0 [shape = 'u32[]', space=smem, size = 0x4, offset = 0x4, fixed_abs, tag = 'smem constant byte address 0x4 - core index']
  #allocation1 [shape = 'u32[144,128]{1,0:T(1,128)}', space=vmem, size = 0x12000, scoped, tag = 'internal scratch']
  %s0 = inlined_call_operand.vmem [shape: f32[1,128], index: 0, kind: input, shape index: {}]
  %s1 = inlined_call_operand.vmem [shape: f32[8,1], index: 1, kind: input, shape index: {}]
  %s2 = inlined_call_operand.hbm [shape: f32[8,128], index: 2, kind: output, shape index: {}]
  %s3 = sld [smem:[#allocation0]]
  $region18: #{tpu_custom_call.1} parent=0
    _
  %s5 = ssub.s32 1, %s3
  %s6 = scalar_select 0, %s5, %s3
  $region1: #{tpu_custom_call.1} parent=0
    #allocation2 [shape = 'u8[4096]{0}', space=vmem, size = 0x1000, scoped, tag = 'output window, operand 0, single buffered']
    #allocation3 [shape = 's32[1]{0}', space=sflag, size = 0x4, scoped, tag = 'scoped memory for tpu_custom_call.1']
    %7 = vsyncpa [#allocation3], 0
    // Predicated region
    $region2: #{tpu_custom_call.1} parent=1 // pred_check
      _
    $region3: #{tpu_custom_call.1} parent=1 // pred_check_branch
      %9 = sbr.rel (0) target = $region5
    $region4: #{tpu_custom_call.1} parent=1 // pred_region
      _
    $region5: #{tpu_custom_call.1} parent=1 // pred_fallthru
      _
    // Predicated region
    $region6: #{tpu_custom_call.1} parent=1 // pred_check
      _
    $region7: #{tpu_custom_call.1} parent=1 // pred_check_branch
      %11 = sbr.rel (0) target = $region9
    $region8: #{tpu_custom_call.1} parent=1 // pred_region
      _
    $region9: #{tpu_custom_call.1} parent=1 // pred_fallthru
      _
    %v12 = vld [vmem:[%s0] sm:$0x1]
    %v13 = vld [vmem:[%s1] sm:$0xff]
    %v14 = vrcp.pop %v12
    %v15 = vmul.f32 %v12, %v14
    %v16 = vsub.f32 2.0, %v15
    %v17 = vmul.f32 %v14, %v16
    %v18 = vmul.f32 %v12, 0.2
    %v19 = vmul.f32 %v18, %v18
    %v20 = vmul.f32 %v19, %v19
    %v21 = vmul.f32 %v19, %v20
    %v22 = vmul.f32 %v21, 28.0
    %v23 = vsub.f32 1.0, %v22
    %v24 = vmul.f32 %v21, %v18
    %v25 = vmul.f32 %v24, 48.0
    %v26 = vadd.f32 %v23, %v25
    %v27 = vmul.f32 %v24, %v18
    %v28 = vmul.f32 %v27, 21.0
    %v29 = vsub.f32 %v26, %v28
    %vm30 = vcmp.lt.f32.partialorder %v12, 5.0
    %v31 = vsel %vm30, %v29, 0.0
    %v32 = vmul.f32 %v17, 0.6324555
    %v33 = vmul.f32 %v32, %v31
    %35 = vset.pattern.permute.xlu0 0
    %36 = vperm.xlu0 %35, %v13
    %v37 = vpop.permute.xlu0 %36
    %v40 = vlaneseq
    %v41 = vshrl.u32 %v40, 7
    %v42 = vsub.s32 0, %v41
    %v43 = vrot.slane %v12, %v42
    %v45 = vmul.f32 %v37, %v43
    %v46 = vand.u32 2147483647, %v45
    %vm47 = vcmp.le.f32.partialorder %v46, 0.7853982
    %vm48 = vcmp.lt.s32.totalorder %v45, 0
    %v49 = vand.u32 %v45, 2139095040
    %v50 = vshrl.u32 %v49, 23
    %v51 = vsub.s32 %v50, 127
    %v52 = vand.u32 2147483647, %v45
    %v53 = vand.u32 %v52, 8388607
    %v54 = vor.u32 %v53, 8388608
    %v55 = vsub.s32 0, %v54
    %v56 = vadd.s32 %v51, 1
    %vm57 = vcmp.gt.s32.totalorder %v56, 0
    %v58 = vsel %vm57, %v56, 0
    %v59 = vshrl.u32 %v58, 5
    %v60 = vand.u32 %v58, 31
    %v61 = vsub.s32 32, %v60
    %v62 = vshrl.u32 683565275, %v61
    %v63 = vshll.u32 683565275, %v60
    %v64 = vshrl.u32 2475754826, %v61
    %v65 = vor.u32 %v63, %v64
    %v66 = vshll.u32 2475754826, %v60
    %v67 = vshrl.u32 2131351028, %v61
    %v68 = vor.u32 %v66, %v67
    %v69 = vshll.u32 2131351028, %v60
    %v70 = vshrl.u32 2102212464, %v61
    %v71 = vor.u32 %v69, %v70
    %v72 = vshll.u32 2102212464, %v60
    %v73 = vshrl.u32 920167782, %v61
    %v74 = vor.u32 %v72, %v73
    %v75 = vshll.u32 920167782, %v60
    %v76 = vshrl.u32 1326507024, %v61
    %v77 = vor.u32 %v75, %v76
    %vm78 = vcmp.lt.s32.totalorder %v59, 1
    %vm79 = vcmp.lt.s32.totalorder %v59, 2
    %vm80 = vcmp.lt.s32.totalorder %v59, 3
    %vm81 = vcmp.lt.s32.totalorder %v59, 4
    %v82 = vsel %vm78, %v62, %v65
    %v83 = vsel %vm81, %v71, 2102212464
    %v84 = vsel %vm80, %v68, %v83
    %v85 = vsel %vm79, %v82, %v84
    %v86 = vsel %vm78, %v65, %v68
    %v87 = vsel %vm81, %v74, 920167782
    %v88 = vsel %vm80, %v71, %v87
    %v89 = vsel %vm79, %v86, %v88
    %v90 = vsel %vm78, %v68, %v71
    %v91 = vsel %vm81, %v77, 1326507024
    %v92 = vsel %vm80, %v74, %v91
    %v93 = vsel %vm79, %v90, %v92
    %v94 = vshll.u32 %v54, 8
    %v95 = vmul.u32.u64.compose %v94, %v93
    %v96 = vextract.low.u32 %v95
    %v97 = vextract.high.u32 %v95
    %v98 = vmul.u32.u64.compose %v94, %v89
    %v99 = vextract.low.u32 %v98
    %v100 = vextract.high.u32 %v98
    %v101 = vmul.u32 %v94, %v85
    %v102 = vadd.s32 %v97, %v99
    %vm103 = vc.u32 %v97, %v99
    %v104 = vadd.s32 %v100, 1
    %v105 = vsel %vm103, %v104, %v100
    %v106 = vadd.s32 %v101, %v105
    %v107 = vadd.s32 %v106, 536870912
    %v108 = vshrl.u32 %v107, 30
    %v109 = vshll.u32 %v108, 30
    %v110 = vsub.s32 %v106, %v109
    %vm111 = vcmp.lt.s32.totalorder %v110, 0
    %v112 = vsub.s32 0, %v110
    %v113 = vsel %vm111, %v112, %v110
    %v114 = vclz %v113
    %v115 = vsub.s32 %v114, 2
    %vm116 = vcmp.gt.s32.totalorder 0, %v115
    %v117 = vsel %vm116, 0, %v115
    %v118 = vsub.s32 32, %v117
    %v119 = vshll.u32 %v110, %v117
    %v120 = vshrl.u32 %v102, %v118
    %v121 = vor.u32 %v119, %v120
    %v122 = vsub.s32 4294967266, %v117
    %v123 = vadd.s32 %v122, 127
    %v124 = vshll.u32 %v123, 23
    %v125 = vor.u32 4788187, %v124
    %v126 = vand.u32 2147483647, %v125
    %v128 = vcvt.s32.f32 %v121
    %v129 = vmul.f32 %v128, %v126
    %v130 = vxor.u32 %v129, 2147483648
    %v131 = vsel %vm48, %v130, %v129
    %v132 = vsub.s32 4, %v108
    %v133 = vsel %vm48, %v132, %v108
    %v134 = vsel %vm47, %v45, %v131
    %v135 = vsel %vm47, 0, %v133
    %v136 = vcosq.f32.pop %v134
    %v137 = vsinq.f32.pop %v134
    %vm138 = vweird.f32 %v45
    %v139 = vadd.s32 %v135, 3
    %v140 = vand.u32 %v139, 3
    %vm141 = vcmp.lt.s32.totalorder %v140, 2
    %vm142 = vcmp.eq.s32.totalorder %v140, 0
    %v143 = vxor.u32 %v137, 2147483648
    %v144 = vsel %vm142, %v136, %v143
    %vm145 = vcmp.eq.s32.totalorder %v140, 2
    %v146 = vxor.u32 %v136, 2147483648
    %v147 = vsel %vm145, %v146, %v137
    %v148 = vsel %vm141, %v144, %v147
    %v149 = vsel %vm138, nan, %v148
    %v151 = vlaneseq
    %v152 = vshrl.u32 %v151, 7
    %v153 = vsub.s32 0, %v152
    %v154 = vrot.slane %v33, %v153
    %v156 = vmul.f32 %v149, %v154
    %157 = vst [vmem:[#allocation2] sm:$0xff] %v156
    // Predicated region
    $region10: #{tpu_custom_call.1} parent=1 // pred_check
      _
    $region11: #{tpu_custom_call.1} parent=1 // pred_check_branch
      %159 = sbr.rel (0) target = $region13
    $region12: #{tpu_custom_call.1} parent=1 // pred_region
      %s161 = ssub.s32 128, 128
      %162 = vsyncadd [#allocation3], %s161
      %s164 = sshll.u32 [#allocation2], 4
      %s165 = int_to_ptr.vmem [resolvable:$true] %s164
      %167 = dma.vmem_to_hbm [thread:$0]  %s165, 128, %s2, [#allocation3]
    $region13: #{tpu_custom_call.1} parent=1 // pred_fallthru
      _
    // Predicated region
    $region14: #{tpu_custom_call.1} parent=1 // pred_check
      _
    $region15: #{tpu_custom_call.1} parent=1 // pred_check_branch
      %169 = sbr.rel (0) target = $region17
    $region16: #{tpu_custom_call.1} parent=1 // pred_region
      %170 = dma.done [#allocation3], 128
    $region17: #{tpu_custom_call.1} parent=1 // pred_fallthru
      _
    %171 = vsyncpa [#allocation3], 1

</llo_original>
